<compile_context>
chip_gen: v7x
topology: tpu7x:2x2x1
jax: 0.10.0
libtpu: 0.0.40
codegen_flags: <defaults>
</compile_context>

<pallas_src>
import jax
import jax.numpy as jnp
from jax import lax
from jax.experimental import pallas as pl
from jax.experimental.pallas import tpu as pltpu


_MAX_TK = 2048   # cap on the FC1 reduction tile (multiple of 128); safe on v7x


def _round_up(x, m):
    return ((x + m - 1) // m) * m


def _choose_tk(d_pad, cap=_MAX_TK):
    """Largest multiple of 128 that divides d_pad and is <= cap.

    d_pad is already a multiple of 128, so 128 always works as a fallback.
    For the real TrackHead head (d_in = 256*7*7 = 12544) this picks 1792,
    i.e. zero K-padding and full 256-wide MXU tiles.
    """
    t = (min(cap, d_pad) // 128) * 128
    while t > 128:
        if d_pad % t == 0:
            return t
        t -= 128
    return 128


# ----------------------------- Pallas kernels -----------------------------

def _mlp2_kernel(x_ref, r_ref, w1_ref, b1_ref, w2_ref, b2_ref,
                 xo_ref, ro_ref, xacc_ref, racc_ref):
    """FC1 (reduced over grid axis 0) + bias + ReLU + FC2 + bias for both the
    current-frame and reference-frame ROI slabs in a single launch.

    Activations arrive as f32 and are cast to bf16 in-kernel; accumulation is
    f32; features are written back in bf16.  ReLU is applied only between the
    two FCs, matching the PyTorch loop for num_fcs=2.
    """
    k = pl.program_id(0)
    w1 = w1_ref[...]

    @pl.when(k == 0)
    def _():
        xacc_ref[...] = jnp.zeros_like(xacc_ref)
        racc_ref[...] = jnp.zeros_like(racc_ref)

    xacc_ref[...] += jnp.dot(x_ref[...].astype(w1.dtype), w1,
                             preferred_element_type=jnp.float32)
    racc_ref[...] += jnp.dot(r_ref[...].astype(w1.dtype), w1,
                             preferred_element_type=jnp.float32)

    @pl.when(k == pl.num_programs(0) - 1)
    def _():
        w2, b1, b2 = w2_ref[...], b1_ref[...], b2_ref[...]
        hx = jnp.maximum(xacc_ref[...] + b1, 0.0)                # f32
        hr = jnp.maximum(racc_ref[...] + b1, 0.0)
        xo_ref[...] = (jnp.dot(hx.astype(w2.dtype), w2,
                               preferred_element_type=jnp.float32)
                       + b2).astype(xo_ref.dtype)
        ro_ref[...] = (jnp.dot(hr.astype(w2.dtype), w2,
                               preferred_element_type=jnp.float32)
                       + b2).astype(ro_ref.dtype)


def _mlp_forward(x_flat, ref_flat, w1p, b1p, w2p, b2p, *, tk):
    """x_flat (n_x, d_pad) f32, ref_flat (n_ref, d_pad) f32 ->
    (x_feat (n_x, f_pad) bf16, ref_feat (n_ref, f_pad) bf16)."""
    n_x, d_pad = x_flat.shape
    n_ref = ref_flat.shape[0]
    f_pad = w1p.shape[1]
    k_steps = d_pad // tk

    # TODO(synk): for very large ROI counts (thousands of rows) add a row
    # grid axis (tm ~ 512) instead of keeping full-extent row blocks.
    cost = pl.CostEstimate(
        flops=2 * (n_x + n_ref) * (d_pad * f_pad + f_pad * f_pad),
        transcendentals=0,
        bytes_accessed=(x_flat.size * 4 + ref_flat.size * 4
                        + w1p.size * 2 + w2p.size * 2
                        + (b1p.size + b2p.size) * 4
                        + (n_x + n_ref) * f_pad * 2),
    )

    return pl.pallas_call(
        _mlp2_kernel,
        out_shape=(jax.ShapeDtypeStruct((n_x, f_pad), jnp.bfloat16),
                   jax.ShapeDtypeStruct((n_ref, f_pad), jnp.bfloat16)),
        grid_spec=pltpu.PrefetchScalarGridSpec(
            num_scalar_prefetch=0,
            grid=(k_steps,),
            in_specs=[
                pl.BlockSpec((n_x, tk), lambda k: (0, k)),        # x rows (f32)
                pl.BlockSpec((n_ref, tk), lambda k: (0, k)),      # ref rows (f32)
                pl.BlockSpec((tk, f_pad), lambda k: (k, 0)),      # W1 K-slab (bf16)
                pl.BlockSpec((1, f_pad), lambda k: (0, 0)),       # b1 (resident)
                pl.BlockSpec((f_pad, f_pad), lambda k: (0, 0)),   # W2 (resident)
                pl.BlockSpec((1, f_pad), lambda k: (0, 0)),       # b2 (resident)
            ],
            out_specs=(pl.BlockSpec((n_x, f_pad), lambda k: (0, 0)),
                       pl.BlockSpec((n_ref, f_pad), lambda k: (0, 0))),
            scratch_shapes=[pltpu.VMEM((n_x, f_pad), jnp.float32),
                            pltpu.VMEM((n_ref, f_pad), jnp.float32)],
        ),
        compiler_params=pltpu.CompilerParams(
            dimension_semantics=("arbitrary",),      # K is a reduction axis
            vmem_limit_bytes=48 * 1024 * 1024,       # within v7x's 64 MiB
        ),
        cost_estimate=cost,
    )(x_flat, ref_flat, w1p, b1p, w2p, b2p)


def _match_kernel(xf_ref, rf_ref, o_ref):
    """x_feat (n_x, F) contracted with ref_feat (n_ref, F) on the last dims
    (i.e. x @ ref^T) — bf16 MXU inputs, f32 accumulation, no host transpose."""
    o_ref[...] = lax.dot_general(
        xf_ref[...], rf_ref[...],
        dimension_numbers=(((1,), (1,)), ((), ())),
        preferred_element_type=jnp.float32).astype(o_ref.dtype)


def _match_prod(x_feat, ref_feat):
    """x_feat (n_x, F) bf16, ref_feat (n_ref, F) bf16 -> (n_x, n_ref) f32."""
    n_x, f_pad = x_feat.shape
    n_ref = ref_feat.shape[0]
    # TODO(synk): for large n_ref / many-image video batches, tile n_ref and
    # use scalar-prefetch per-image offsets to compute only the diagonal
    # blocks instead of the full cross product.
    return pl.pallas_call(
        _match_kernel,
        out_shape=jax.ShapeDtypeStruct((n_x, n_ref), jnp.float32),
        grid_spec=pltpu.PrefetchScalarGridSpec(
            num_scalar_prefetch=0,
            grid=(1,),
            in_specs=[pl.BlockSpec((n_x, f_pad), lambda i: (0, 0)),
                      pl.BlockSpec((n_ref, f_pad), lambda i: (0, 0))],
            out_specs=pl.BlockSpec((n_x, n_ref), lambda i: (0, 0)),
        ),
        compiler_params=pltpu.CompilerParams(
            dimension_semantics=("arbitrary",),
        ),
    )(x_feat, ref_feat)


# ------------------------------ Forward glue -------------------------------

def track_head_forward(x, ref_x, x_n, ref_x_n, w1, b1, w2, b2):
    """Mirror of TrackHead.forward (with_avg_pool=False, dynamic=True).

    x:     (sum(x_n),     C, H, W)
    ref_x: (sum(ref_x_n), C, H, W)
    Returns a list of per-image match scores, each (x_n[i], ref_x_n[i] + 1),
    with column 0 the all-zero "non-match" dummy entry.
    """
    assert len(x_n) == len(ref_x_n)
    n_x, n_ref = x.shape[0], ref_x.shape[0]
    assert sum(x_n) == n_x and sum(ref_x_n) == n_ref

    d_in = x.shape[1] * x.shape[2] * x.shape[3]
    f_out = w1.shape[1]

    x_flat = x.reshape(n_x, -1)          # torch .view(N, -1) equivalent
    ref_flat = ref_x.reshape(n_ref, -1)

    f_pad = _round_up(f_out, 128)        # lane-dense FC width
    d_pad = _round_up(d_in, 128)
    tk = _choose_tk(d_pad)

    if d_pad != d_in:
        # TODO(synk): K padding costs one extra HBM pass over the ROI slab;
        # only hit when C*H*W is not a multiple of 128.
        x_flat = jnp.pad(x_flat, ((0, 0), (0, d_pad - d_in)))
        ref_flat = jnp.pad(ref_flat, ((0, 0), (0, d_pad - d_in)))

    # Parameters are tiny relative to the activation stream: pad/cast once
    # in glue (in a real model this happens once at load time).
    w1p = jnp.pad(w1, ((0, d_pad - d_in), (0, f_pad - f_out))).astype(jnp.bfloat16)
    w2p = jnp.pad(w2, ((0, f_pad - f_out), (0, f_pad - f_out))).astype(jnp.bfloat16)
    b1p = jnp.pad(b1, ((0, 0), (0, f_pad - f_out))).astype(jnp.float32)
    b2p = jnp.pad(b2, ((0, 0), (0, f_pad - f_out))).astype(jnp.float32)

    # One launch handles both slabs -> W1 streams through VMEM exactly once.
    x_feat, ref_feat = _mlp_forward(x_flat, ref_flat, w1p, b1p, w2p, b2p, tk=tk)

    prods = _match_prod(x_feat, ref_feat)             # (n_x, n_ref) f32

    # Per-image diagonal blocks + dummy non-match column (dynamic=True).
    match_score = []
    off_x = off_r = 0
    for m, k in zip(x_n, ref_x_n):
        block = prods[off_x:off_x + m, off_r:off_r + k]
        dummy = jnp.zeros((m, 1), block.dtype)
        match_score.append(jnp.concatenate([dummy, block], axis=1))
        off_x += m
        off_r += k
    return match_score


# ---------------------------------- Main -----------------------------------

if __name__ == "__main__":
    key = jax.random.PRNGKey(0)

    # Small synthetic config consistent with TrackHead.__init__:
    in_channels = 4
    roi_feat_size = 8
    fc_out_channels = 32
    d_in = in_channels * roi_feat_size * roi_feat_size   # 256

    x_n = [3, 5]       # rois per image (current frame)
    ref_x_n = [4, 4]   # rois per image (reference frame)
    n_x, n_ref = sum(x_n), sum(ref_x_n)

    k1, k2, k3, k4 = jax.random.split(key, 4)
    x = jax.random.normal(k1, (n_x, in_channels, roi_feat_size, roi_feat_size),
                          jnp.float32)
    ref_x = jax.random.normal(k2, (n_ref, in_channels, roi_feat_size,
                                   roi_feat_size), jnp.float32)

    # weight ~ N(0, 0.01), bias = 0 (nn.init.normal_ / constant_).
    w1 = 0.01 * jax.random.normal(k3, (d_in, fc_out_channels), jnp.float32)
    b1 = jnp.zeros((1, fc_out_channels), jnp.float32)
    w2 = 0.01 * jax.random.normal(k4, (fc_out_channels, fc_out_channels),
                                  jnp.float32)
    b2 = jnp.zeros((1, fc_out_channels), jnp.float32)

    match_scores = track_head_forward(x, ref_x, x_n, ref_x_n, w1, b1, w2, b2)
    match_scores = [jax.block_until_ready(s) for s in match_scores]

    # Shapes are (x_n[i], ref_x_n[i] + 1)
    assert [tuple(s.shape) for s in match_scores] == \
        [(m, k + 1) for m, k in zip(x_n, ref_x_n)]

    # Numerical check vs. a plain-JAX reference using the same bf16 casts
    # (bf16 weights/activations, f32 accumulation, bf16 features).
    def ref_fc(a):
        h = jnp.maximum(
            jnp.dot(a.astype(jnp.bfloat16), w1.astype(jnp.bfloat16),
                    preferred_element_type=jnp.float32) + b1, 0.0)
        o = jnp.dot(h.astype(jnp.bfloat16), w2.astype(jnp.bfloat16),
                    preferred_element_type=jnp.float32) + b2
        return o.astype(jnp.bfloat16).astype(jnp.float32)

    xf = ref_fc(x.reshape(n_x, -1))
    rf = ref_fc(ref_x.reshape(n_ref, -1))
    off_x = off_r = 0
    for s, m, k in zip(match_scores, x_n, ref_x_n):
        want = jnp.concatenate(
            [jnp.zeros((m, 1), jnp.float32),
             xf[off_x:off_x + m] @ rf[off_r:off_r + k].T], axis=1)
        assert bool(jnp.allclose(s, want, rtol=5e-2, atol=2e-4)), \
            "match score mismatch vs reference"
        off_x += m
        off_r += k

    print("KERNEL_OK")
</pallas_src>

<mosaic_0001>
module attributes {stable_mosaic.version = 11 : i64} {
  func.func @_mlp2_kernel(%arg0: i32, %arg1: memref<8x256xf32, #tpu.memory_space<vmem>>, %arg2: memref<8x256xf32, #tpu.memory_space<vmem>>, %arg3: memref<256x128xbf16, #tpu.memory_space<vmem>>, %arg4: memref<1x128xf32, #tpu.memory_space<vmem>>, %arg5: memref<128x128xbf16, #tpu.memory_space<vmem>>, %arg6: memref<1x128xf32, #tpu.memory_space<vmem>>, %arg7: memref<8x128xbf16, #tpu.memory_space<vmem>>, %arg8: memref<8x128xbf16, #tpu.memory_space<vmem>>, %arg9: memref<8x128xf32, #tpu.memory_space<vmem>>, %arg10: memref<8x128xf32, #tpu.memory_space<vmem>>) attributes {dimension_semantics = [#tpu.dimension_semantics<arbitrary>], iteration_bounds = array<i64: 1>, scalar_prefetch = 0 : i64, scratch_operands = 2 : i64, tpu.core_type = #tpu.core_type<tc>, window_params = [{transform_indices = @transform_0, window_bounds = array<i64: 8, 256>}, {transform_indices = @transform_1, window_bounds = array<i64: 8, 256>}, {transform_indices = @transform_2, window_bounds = array<i64: 256, 128>}, {pipeline_mode = #tpu.pipeline_mode<synchronous>, transform_indices = @transform_3, window_bounds = array<i64: 1, 128>}, {pipeline_mode = #tpu.pipeline_mode<synchronous>, transform_indices = @transform_4, window_bounds = array<i64: 128, 128>}, {pipeline_mode = #tpu.pipeline_mode<synchronous>, transform_indices = @transform_5, window_bounds = array<i64: 1, 128>}, {pipeline_mode = #tpu.pipeline_mode<synchronous>, transform_indices = @transform_6, window_bounds = array<i64: 8, 128>}, {pipeline_mode = #tpu.pipeline_mode<synchronous>, transform_indices = @transform_7, window_bounds = array<i64: 8, 128>}]} {
    %c0 = arith.constant 0 : index
    %c0_0 = arith.constant 0 : index
    %0 = vector.load %arg3[%c0, %c0_0] : memref<256x128xbf16, #tpu.memory_space<vmem>>, vector<256x128xbf16>
    %c0_i32 = arith.constant 0 : i32
    %1 = arith.cmpi eq, %arg0, %c0_i32 : i32
    %2 = arith.extui %1 : i1 to i32
    %c0_i32_1 = arith.constant 0 : i32
    %3 = arith.cmpi ne, %2, %c0_i32_1 : i32
    scf.if %3 {
      %cst_17 = arith.constant 0.000000e+00 : f32
      %19 = vector.broadcast %cst_17 : f32 to vector<8x128xf32>
      %c0_18 = arith.constant 0 : index
      %c0_19 = arith.constant 0 : index
      %20 = vector.load %arg9[%c0_18, %c0_19] : memref<8x128xf32, #tpu.memory_space<vmem>>, vector<8x128xf32>
      tpu.vector_store %arg9[%c0_18, %c0_19], %19 {strides = array<i32>} : memref<8x128xf32, #tpu.memory_space<vmem>>, vector<8x128xf32>,
      %cst_20 = arith.constant 0.000000e+00 : f32
      %21 = vector.broadcast %cst_20 : f32 to vector<8x128xf32>
      %c0_21 = arith.constant 0 : index
      %c0_22 = arith.constant 0 : index
      %22 = vector.load %arg10[%c0_21, %c0_22] : memref<8x128xf32, #tpu.memory_space<vmem>>, vector<8x128xf32>
      tpu.vector_store %arg10[%c0_21, %c0_22], %21 {strides = array<i32>} : memref<8x128xf32, #tpu.memory_space<vmem>>, vector<8x128xf32>,
    } else {
    }
    %c0_2 = arith.constant 0 : index
    %c0_3 = arith.constant 0 : index
    %4 = vector.load %arg9[%c0_2, %c0_3] : memref<8x128xf32, #tpu.memory_space<vmem>>, vector<8x128xf32>
    %c0_4 = arith.constant 0 : index
    %c0_5 = arith.constant 0 : index
    %5 = vector.load %arg1[%c0_4, %c0_5] : memref<8x256xf32, #tpu.memory_space<vmem>>, vector<8x256xf32>
    %6 = arith.truncf %5 : vector<8x256xf32> to vector<8x256xbf16>
    %cst = arith.constant dense<0.000000e+00> : vector<8x128xf32>
    %7 = tpu.matmul %6, %0, %cst {dimension_numbers = #tpu.dot_dimension_numbers<[1], [0], [0], [1], [0, 0, 1, 1], [], []>} : vector<8x256xbf16>, vector<256x128xbf16>, vector<8x128xf32> -> vector<8x128xf32>
    %8 = arith.addf %4, %7 : vector<8x128xf32>
    %c0_6 = arith.constant 0 : index
    %c0_7 = arith.constant 0 : index
    %9 = vector.load %arg9[%c0_6, %c0_7] : memref<8x128xf32, #tpu.memory_space<vmem>>, vector<8x128xf32>
    tpu.vector_store %arg9[%c0_6, %c0_7], %8 {strides = array<i32>} : memref<8x128xf32, #tpu.memory_space<vmem>>, vector<8x128xf32>,
    %c0_8 = arith.constant 0 : index
    %c0_9 = arith.constant 0 : index
    %10 = vector.load %arg10[%c0_8, %c0_9] : memref<8x128xf32, #tpu.memory_space<vmem>>, vector<8x128xf32>
    %c0_10 = arith.constant 0 : index
    %c0_11 = arith.constant 0 : index
    %11 = vector.load %arg2[%c0_10, %c0_11] : memref<8x256xf32, #tpu.memory_space<vmem>>, vector<8x256xf32>
    %12 = arith.truncf %11 : vector<8x256xf32> to vector<8x256xbf16>
    %cst_12 = arith.constant dense<0.000000e+00> : vector<8x128xf32>
    %13 = tpu.matmul %12, %0, %cst_12 {dimension_numbers = #tpu.dot_dimension_numbers<[1], [0], [0], [1], [0, 0, 1, 1], [], []>} : vector<8x256xbf16>, vector<256x128xbf16>, vector<8x128xf32> -> vector<8x128xf32>
    %14 = arith.addf %10, %13 : vector<8x128xf32>
    %c0_13 = arith.constant 0 : index
    %c0_14 = arith.constant 0 : index
    %15 = vector.load %arg10[%c0_13, %c0_14] : memref<8x128xf32, #tpu.memory_space<vmem>>, vector<8x128xf32>
    tpu.vector_store %arg10[%c0_13, %c0_14], %14 {strides = array<i32>} : memref<8x128xf32, #tpu.memory_space<vmem>>, vector<8x128xf32>,
    %c0_i32_15 = arith.constant 0 : i32
    %16 = arith.cmpi eq, %arg0, %c0_i32_15 : i32
    %17 = arith.extui %16 : i1 to i32
    %c0_i32_16 = arith.constant 0 : i32
    %18 = arith.cmpi ne, %17, %c0_i32_16 : i32
    scf.if %18 {
      %c0_17 = arith.constant 0 : index
      %c0_18 = arith.constant 0 : index
      %19 = vector.load %arg5[%c0_17, %c0_18] : memref<128x128xbf16, #tpu.memory_space<vmem>>, vector<128x128xbf16>
      %c0_19 = arith.constant 0 : index
      %c0_20 = arith.constant 0 : index
      %20 = vector.load %arg4[%c0_19, %c0_20] : memref<1x128xf32, #tpu.memory_space<vmem>>, vector<1x128xf32>
      %c0_21 = arith.constant 0 : index
      %c0_22 = arith.constant 0 : index
      %21 = vector.load %arg6[%c0_21, %c0_22] : memref<1x128xf32, #tpu.memory_space<vmem>>, vector<1x128xf32>
      %c0_23 = arith.constant 0 : index
      %c0_24 = arith.constant 0 : index
      %22 = vector.load %arg9[%c0_23, %c0_24] : memref<8x128xf32, #tpu.memory_space<vmem>>, vector<8x128xf32>
      %23 = vector.broadcast %20 : vector<1x128xf32> to vector<8x128xf32>
      %24 = arith.addf %22, %23 : vector<8x128xf32>
      %cst_25 = arith.constant 0.000000e+00 : f32
      %25 = vector.broadcast %cst_25 : f32 to vector<8x128xf32>
      %26 = arith.maximumf %24, %25 : vector<8x128xf32>
      %c0_26 = arith.constant 0 : index
      %c0_27 = arith.constant 0 : index
      %27 = vector.load %arg10[%c0_26, %c0_27] : memref<8x128xf32, #tpu.memory_space<vmem>>, vector<8x128xf32>
      %28 = vector.broadcast %20 : vector<1x128xf32> to vector<8x128xf32>
      %29 = arith.addf %27, %28 : vector<8x128xf32>
      %cst_28 = arith.constant 0.000000e+00 : f32
      %30 = vector.broadcast %cst_28 : f32 to vector<8x128xf32>
      %31 = arith.maximumf %29, %30 : vector<8x128xf32>
      %32 = arith.truncf %26 : vector<8x128xf32> to vector<8x128xbf16>
      %cst_29 = arith.constant dense<0.000000e+00> : vector<8x128xf32>
      %33 = tpu.matmul %32, %19, %cst_29 {dimension_numbers = #tpu.dot_dimension_numbers<[1], [0], [0], [1], [0, 0, 1, 1], [], []>} : vector<8x128xbf16>, vector<128x128xbf16>, vector<8x128xf32> -> vector<8x128xf32>
      %34 = vector.broadcast %21 : vector<1x128xf32> to vector<8x128xf32>
      %35 = arith.addf %33, %34 : vector<8x128xf32>
      %36 = arith.truncf %35 : vector<8x128xf32> to vector<8x128xbf16>
      %c0_30 = arith.constant 0 : index
      %c0_31 = arith.constant 0 : index
      %37 = vector.load %arg7[%c0_30, %c0_31] : memref<8x128xbf16, #tpu.memory_space<vmem>>, vector<8x128xbf16>
      tpu.vector_store %arg7[%c0_30, %c0_31], %36 {strides = array<i32>} : memref<8x128xbf16, #tpu.memory_space<vmem>>, vector<8x128xbf16>,
      %38 = arith.truncf %31 : vector<8x128xf32> to vector<8x128xbf16>
      %cst_32 = arith.constant dense<0.000000e+00> : vector<8x128xf32>
      %39 = tpu.matmul %38, %19, %cst_32 {dimension_numbers = #tpu.dot_dimension_numbers<[1], [0], [0], [1], [0, 0, 1, 1], [], []>} : vector<8x128xbf16>, vector<128x128xbf16>, vector<8x128xf32> -> vector<8x128xf32>
      %40 = vector.broadcast %21 : vector<1x128xf32> to vector<8x128xf32>
      %41 = arith.addf %39, %40 : vector<8x128xf32>
      %42 = arith.truncf %41 : vector<8x128xf32> to vector<8x128xbf16>
      %c0_33 = arith.constant 0 : index
      %c0_34 = arith.constant 0 : index
      %43 = vector.load %arg8[%c0_33, %c0_34] : memref<8x128xbf16, #tpu.memory_space<vmem>>, vector<8x128xbf16>
      tpu.vector_store %arg8[%c0_33, %c0_34], %42 {strides = array<i32>} : memref<8x128xbf16, #tpu.memory_space<vmem>>, vector<8x128xbf16>,
    } else {
    }
    return
  }
  func.func @transform_0(%arg0: i32) -> (i32, i32) {
    %c0_i32 = arith.constant 0 : i32
    %c0_i32_0 = arith.constant 0 : i32
    return %c0_i32, %arg0 : i32, i32
  }
  func.func @transform_1(%arg0: i32) -> (i32, i32) {
    %c0_i32 = arith.constant 0 : i32
    %c0_i32_0 = arith.constant 0 : i32
    return %c0_i32, %arg0 : i32, i32
  }
  func.func @transform_2(%arg0: i32) -> (i32, i32) {
    %c0_i32 = arith.constant 0 : i32
    %c0_i32_0 = arith.constant 0 : i32
    return %arg0, %c0_i32 : i32, i32
  }
  func.func @transform_3(%arg0: i32) -> (i32, i32) {
    %c0_i32 = arith.constant 0 : i32
    %c0_i32_0 = arith.constant 0 : i32
    %c0_i32_1 = arith.constant 0 : i32
    return %c0_i32, %c0_i32_0 : i32, i32
  }
  func.func @transform_4(%arg0: i32) -> (i32, i32) {
    %c0_i32 = arith.constant 0 : i32
    %c0_i32_0 = arith.constant 0 : i32
    %c0_i32_1 = arith.constant 0 : i32
    return %c0_i32, %c0_i32_0 : i32, i32
  }
  func.func @transform_5(%arg0: i32) -> (i32, i32) {
    %c0_i32 = arith.constant 0 : i32
    %c0_i32_0 = arith.constant 0 : i32
    %c0_i32_1 = arith.constant 0 : i32
    return %c0_i32, %c0_i32_0 : i32, i32
  }
  func.func @transform_6(%arg0: i32) -> (i32, i32) {
    %c0_i32 = arith.constant 0 : i32
    %c0_i32_0 = arith.constant 0 : i32
    %c0_i32_1 = arith.constant 0 : i32
    return %c0_i32, %c0_i32_0 : i32, i32
  }
  func.func @transform_7(%arg0: i32) -> (i32, i32) {
    %c0_i32 = arith.constant 0 : i32
    %c0_i32_0 = arith.constant 0 : i32
    %c0_i32_1 = arith.constant 0 : i32
    return %c0_i32, %c0_i32_0 : i32, i32
  }
}

</mosaic_0001>

<llo_original>
// kernel: tpu_custom_call.1
$region0: #{tpu_custom_call.1}
  #allocation0 [shape = 'u32[]', space=smem, size = 0x4, offset = 0x4, fixed_abs, tag = 'smem constant byte address 0x4 - core index']
  #allocation1 [shape = 'u32[144,128]{1,0:T(1,128)}', space=vmem, size = 0x12000, scoped, tag = 'internal scratch']
  #allocation2 [shape = 'f32[8,128]{1,0:T(8,128)}', space=vmem, size = 0x1000, scoped, tag = 'scratch operand']
  #allocation3 [shape = 'f32[8,128]{1,0:T(8,128)}', space=vmem, size = 0x1000, scoped, tag = 'scratch operand']
  %s0 = inlined_call_operand.hbm [shape: f32[8,256], index: 0, kind: input, shape index: {}]
  %s1 = inlined_call_operand.hbm [shape: f32[8,256], index: 1, kind: input, shape index: {}]
  %s2 = inlined_call_operand.hbm [shape: bf16[256,128], index: 2, kind: input, shape index: {}]
  %s3 = inlined_call_operand.vmem [shape: f32[1,128], index: 3, kind: input, shape index: {}]
  %s4 = inlined_call_operand.hbm [shape: bf16[128,128], index: 4, kind: input, shape index: {}]
  %s5 = inlined_call_operand.vmem [shape: f32[1,128], index: 5, kind: input, shape index: {}]
  %s6 = inlined_call_operand.hbm [shape: bf16[8,128], index: 6, kind: output, shape index: {0}]
  %s7 = inlined_call_operand.hbm [shape: bf16[8,128], index: 7, kind: output, shape index: {1}]
  %8 = xla_tuple %s6, %s7
  %s9 = sld [smem:[#allocation0]]
  $region66: #{tpu_custom_call.1} parent=0
    _
  %s11 = ssub.s32 1, %s9
  %s12 = scalar_select 0, %s11, %s9
  $region1: #{tpu_custom_call.1} parent=0
    #allocation4 [shape = 'u8[8192]{0}', space=vmem, size = 0x2000, scoped, tag = 'input window, operand 0, single buffered']
    #allocation5 [shape = 's32[1]{0}', space=sflag, size = 0x4, scoped, tag = 'scoped memory for tpu_custom_call.1']
    #allocation6 [shape = 's32[1]{0}', space=sflag, size = 0x4, scoped, tag = 'scoped memory for tpu_custom_call.1']
    #allocation7 [shape = 'u8[8192]{0}', space=vmem, size = 0x2000, scoped, tag = 'input window, operand 1, single buffered']
    #allocation8 [shape = 's32[1]{0}', space=sflag, size = 0x4, scoped, tag = 'scoped memory for tpu_custom_call.1']
    #allocation9 [shape = 'u8[65536]{0}', space=vmem, size = 0x10000, scoped, tag = 'input window, operand 2, single buffered']
    #allocation10 [shape = 'u8[32768]{0}', space=vmem, size = 0x8000, scoped, tag = 'input window, operand 4, single buffered']
    #allocation11 [shape = 's32[1]{0}', space=sflag, size = 0x4, scoped, tag = 'scoped memory for tpu_custom_call.1']
    #allocation12 [shape = 'u8[2048]{0}', space=vmem, size = 0x800, scoped, tag = 'output window, operand 0, single buffered']
    #allocation13 [shape = 'u8[2048]{0}', space=vmem, size = 0x800, scoped, tag = 'output window, operand 1, single buffered']
    #allocation14 [shape = 's32[1]{0}', space=sflag, size = 0x4, scoped, tag = 'scoped memory for tpu_custom_call.1']
    %13 = vsyncpa [#allocation5], 0
    %14 = vsyncpa [#allocation8], 0
    %15 = vsyncpa [#allocation11], 0
    %16 = vsyncpa [#allocation6], 0
    %17 = vsyncpa [#allocation14], 0
    // Predicated region
    $region2: #{tpu_custom_call.1} parent=1 // pred_check
      _
    $region3: #{tpu_custom_call.1} parent=1 // pred_check_branch
      %19 = sbr.rel (0) target = $region5
    $region4: #{tpu_custom_call.1} parent=1 // pred_region
      %s21 = ssub.s32 256, 256
      %22 = vsyncadd [#allocation5], %s21
      %s24 = sshll.u32 [#allocation4], 4
      %s25 = int_to_ptr.vmem [resolvable:$true] %s24
      %27 = dma.hbm_to_vmem [thread:$0]  %s0, 256, %s25, [#allocation5]
    $region5: #{tpu_custom_call.1} parent=1 // pred_fallthru
      _
    // Predicated region
    $region6: #{tpu_custom_call.1} parent=1 // pred_check
      _
    $region7: #{tpu_custom_call.1} parent=1 // pred_check_branch
      %29 = sbr.rel (0) target = $region9
    $region8: #{tpu_custom_call.1} parent=1 // pred_region
      %s31 = ssub.s32 256, 256
      %32 = vsyncadd [#allocation8], %s31
      %s34 = sshll.u32 [#allocation7], 4
      %s35 = int_to_ptr.vmem [resolvable:$true] %s34
      %37 = dma.hbm_to_vmem [thread:$0]  %s1, 256, %s35, [#allocation8]
    $region9: #{tpu_custom_call.1} parent=1 // pred_fallthru
      _
    // Predicated region
    $region10: #{tpu_custom_call.1} parent=1 // pred_check
      _
    $region11: #{tpu_custom_call.1} parent=1 // pred_check_branch
      %39 = sbr.rel (0) target = $region13
    $region12: #{tpu_custom_call.1} parent=1 // pred_region
      %s41 = ssub.s32 2048, 2048
      %42 = vsyncadd [#allocation8], %s41
      %s43 = sshll.u32 [#allocation9], 4
      %s44 = int_to_ptr.vmem [resolvable:$true] %s43
      %49 = dma.hbm_to_vmem [thread:$0]  %s2, 2048, %s44, [#allocation8], 64, 64, 4
    $region13: #{tpu_custom_call.1} parent=1 // pred_fallthru
      _
    // Predicated region
    $region14: #{tpu_custom_call.1} parent=1 // pred_check
      _
    $region15: #{tpu_custom_call.1} parent=1 // pred_check_branch
      %51 = sbr.rel (0) target = $region17
    $region16: #{tpu_custom_call.1} parent=1 // pred_region
      _
    $region17: #{tpu_custom_call.1} parent=1 // pred_fallthru
      _
    // Predicated region
    $region18: #{tpu_custom_call.1} parent=1 // pred_check
      _
    $region19: #{tpu_custom_call.1} parent=1 // pred_check_branch
      %53 = sbr.rel (0) target = $region21
    $region20: #{tpu_custom_call.1} parent=1 // pred_region
      %s55 = ssub.s32 1024, 1024
      %56 = vsyncadd [#allocation11], %s55
      %s57 = sshll.u32 [#allocation10], 4
      %s58 = int_to_ptr.vmem [resolvable:$true] %s57
      %63 = dma.hbm_to_vmem [thread:$0]  %s4, 1024, %s58, [#allocation11], 64, 64, 4
    $region21: #{tpu_custom_call.1} parent=1 // pred_fallthru
      _
    // Predicated region
    $region22: #{tpu_custom_call.1} parent=1 // pred_check
      _
    $region23: #{tpu_custom_call.1} parent=1 // pred_check_branch
      %65 = sbr.rel (0) target = $region25
    $region24: #{tpu_custom_call.1} parent=1 // pred_region
      _
    $region25: #{tpu_custom_call.1} parent=1 // pred_fallthru
      _
    // Predicated region
    $region26: #{tpu_custom_call.1} parent=1 // pred_check
      _
    $region27: #{tpu_custom_call.1} parent=1 // pred_check_branch
      %67 = sbr.rel (0) target = $region29
    $region28: #{tpu_custom_call.1} parent=1 // pred_region
      %68 = dma.done [#allocation5], 256
    $region29: #{tpu_custom_call.1} parent=1 // pred_fallthru
      _
    // Predicated region
    $region30: #{tpu_custom_call.1} parent=1 // pred_check
      _
    $region31: #{tpu_custom_call.1} parent=1 // pred_check_branch
      %70 = sbr.rel (0) target = $region33
    $region32: #{tpu_custom_call.1} parent=1 // pred_region
      %71 = dma.done [#allocation8], 256
    $region33: #{tpu_custom_call.1} parent=1 // pred_fallthru
      _
    // Predicated region
    $region34: #{tpu_custom_call.1} parent=1 // pred_check
      _
    $region35: #{tpu_custom_call.1} parent=1 // pred_check_branch
      %73 = sbr.rel (0) target = $region37
    $region36: #{tpu_custom_call.1} parent=1 // pred_region
      %74 = dma.done [#allocation8], 2048
    $region37: #{tpu_custom_call.1} parent=1 // pred_fallthru
      _
    // Predicated region
    $region38: #{tpu_custom_call.1} parent=1 // pred_check
      _
    $region39: #{tpu_custom_call.1} parent=1 // pred_check_branch
      %76 = sbr.rel (0) target = $region41
    $region40: #{tpu_custom_call.1} parent=1 // pred_region
      %77 = dma.done [#allocation11], 1024
    $region41: #{tpu_custom_call.1} parent=1 // pred_fallthru
      _
    %v79 = vld [vmem:[#allocation9] sm:$0xf]
    %v80 = vld [vmem:[#allocation9 + $0x4] sm:$0xf]
    %v81 = vld [vmem:[#allocation9 + $0x8] sm:$0xf]
    %v82 = vld [vmem:[#allocation9 + $0xc] sm:$0xf]
    %v83 = vld [vmem:[#allocation9 + $0x10] sm:$0xf]
    %v84 = vld [vmem:[#allocation9 + $0x14] sm:$0xf]
    %v85 = vld [vmem:[#allocation9 + $0x18] sm:$0xf]
    %v86 = vld [vmem:[#allocation9 + $0x1c] sm:$0xf]
    %v87 = vld [vmem:[#allocation9 + $0x20] sm:$0xf]
    %v88 = vld [vmem:[#allocation9 + $0x24] sm:$0xf]
    %v89 = vld [vmem:[#allocation9 + $0x28] sm:$0xf]
    %v90 = vld [vmem:[#allocation9 + $0x2c] sm:$0xf]
    %v91 = vld [vmem:[#allocation9 + $0x30] sm:$0xf]
    %v92 = vld [vmem:[#allocation9 + $0x34] sm:$0xf]
    %v93 = vld [vmem:[#allocation9 + $0x38] sm:$0xf]
    %v94 = vld [vmem:[#allocation9 + $0x3c] sm:$0xf]
    %v95 = vld [vmem:[#allocation9 + $0x40] sm:$0xf]
    %v96 = vld [vmem:[#allocation9 + $0x44] sm:$0xf]
    %v97 = vld [vmem:[#allocation9 + $0x48] sm:$0xf]
    %v98 = vld [vmem:[#allocation9 + $0x4c] sm:$0xf]
    %v99 = vld [vmem:[#allocation9 + $0x50] sm:$0xf]
    %v100 = vld [vmem:[#allocation9 + $0x54] sm:$0xf]
    %v101 = vld [vmem:[#allocation9 + $0x58] sm:$0xf]
    %v102 = vld [vmem:[#allocation9 + $0x5c] sm:$0xf]
    %v103 = vld [vmem:[#allocation9 + $0x60] sm:$0xf]
    %v104 = vld [vmem:[#allocation9 + $0x64] sm:$0xf]
    %v105 = vld [vmem:[#allocation9 + $0x68] sm:$0xf]
    %v106 = vld [vmem:[#allocation9 + $0x6c] sm:$0xf]
    %v107 = vld [vmem:[#allocation9 + $0x70] sm:$0xf]
    %v108 = vld [vmem:[#allocation9 + $0x74] sm:$0xf]
    %v109 = vld [vmem:[#allocation9 + $0x78] sm:$0xf]
    %v110 = vld [vmem:[#allocation9 + $0x7c] sm:$0xf]
    %p111 = scmp.eq.s32.totalorder 0, 0
    // Predicated region
    $region42: #{tpu_custom_call.1} parent=1 // pred_check
      %p112 = pneg %p111
    $region43: #{tpu_custom_call.1} parent=1 // pred_check_branch
      %114 = sbr.rel (%p112) target = $region45
    $region44: #{tpu_custom_call.1} parent=1 // pred_region
      %115 = vst [vmem:[#allocation2] sm:$0xff] 0.0
      %116 = vst [vmem:[#allocation3] sm:$0xff] 0.0
    $region45: #{tpu_custom_call.1} parent=1 // pred_fallthru
      _
    %v117 = vld [vmem:[#allocation2] sm:$0xff]
    %v118 = vld [vmem:[#allocation4] sm:$0xff]
    %v119 = vld [vmem:[#allocation4 + $0x8] sm:$0xff]
    %v120 = vpack.c.bf16 %v118, %v118
    %v121 = vpack.c.bf16 %v119, %v119
    %v154 = vunpack.c.l.b16 %v79
    %v155 = vunpack.c.l.b16 %v80
    %v156 = vunpack.c.l.b16 %v81
    %v157 = vunpack.c.l.b16 %v82
    %v158 = vunpack.c.l.b16 %v83
    %v159 = vunpack.c.l.b16 %v84
    %v160 = vunpack.c.l.b16 %v85
    %v161 = vunpack.c.l.b16 %v86
    %v162 = vunpack.c.l.b16 %v87
    %v163 = vunpack.c.l.b16 %v88
    %v164 = vunpack.c.l.b16 %v89
    %v165 = vunpack.c.l.b16 %v90
    %v166 = vunpack.c.l.b16 %v91
    %v167 = vunpack.c.l.b16 %v92
    %v168 = vunpack.c.l.b16 %v93
    %v169 = vunpack.c.l.b16 %v94
    %v170 = vunpack.c.l.b16 %v95
    %v171 = vunpack.c.l.b16 %v96
    %v172 = vunpack.c.l.b16 %v97
    %v173 = vunpack.c.l.b16 %v98
    %v174 = vunpack.c.l.b16 %v99
    %v175 = vunpack.c.l.b16 %v100
    %v176 = vunpack.c.l.b16 %v101
    %v177 = vunpack.c.l.b16 %v102
    %v178 = vunpack.c.l.b16 %v103
    %v179 = vunpack.c.l.b16 %v104
    %v180 = vunpack.c.l.b16 %v105
    %v181 = vunpack.c.l.b16 %v106
    %v182 = vunpack.c.l.b16 %v107
    %v183 = vunpack.c.l.b16 %v108
    %v184 = vunpack.c.l.b16 %v109
    %v185 = vunpack.c.l.b16 %v110
    %v186 = vpack.c.b16 %v155, %v154
    %v187 = vpack.c.b16 %v157, %v156
    %v188 = vpack.c.b16 %v159, %v158
    %v189 = vpack.c.b16 %v161, %v160
    %v190 = vpack.c.b16 %v163, %v162
    %v191 = vpack.c.b16 %v165, %v164
    %v192 = vpack.c.b16 %v167, %v166
    %v193 = vpack.c.b16 %v169, %v168
    %v194 = vpack.c.b16 %v171, %v170
    %v195 = vpack.c.b16 %v173, %v172
    %v196 = vpack.c.b16 %v175, %v174
    %v197 = vpack.c.b16 %v177, %v176
    %v198 = vpack.c.b16 %v179, %v178
    %v199 = vpack.c.b16 %v181, %v180
    %v200 = vpack.c.b16 %v183, %v182
    %v201 = vpack.c.b16 %v185, %v184
    %218 = vmatprep.subr.bf16.mxu0 0
    %219 = vmatpush1.bf16.msra.mxu0 %v186
    %220 = vmatprep.subr.bf16.mxu0 0
    %221 = vmatpush1.bf16.msra.mxu0 %v187
    %222 = vmatprep.subr.bf16.mxu0 0
    %223 = vmatpush1.bf16.msra.mxu0 %v188
    %224 = vmatprep.subr.bf16.mxu0 0
    %225 = vmatpush1.bf16.msra.mxu0 %v189
    %226 = vmatprep.subr.bf16.mxu0 0
    %227 = vmatpush1.bf16.msra.mxu0 %v190
    %228 = vmatprep.subr.bf16.mxu0 0
    %229 = vmatpush1.bf16.msra.mxu0 %v191
    %230 = vmatprep.subr.bf16.mxu0 0
    %231 = vmatpush1.bf16.msra.mxu0 %v192
    %232 = vmatprep.subr.bf16.mxu0 0
    %233 = vmatpush1.bf16.msra.mxu0 %v193
    %234 = vmatprep.subr.bf16.mxu0 0
    %235 = vmatpush1.bf16.msra.mxu0 %v194
    %236 = vmatprep.subr.bf16.mxu0 0
    %237 = vmatpush1.bf16.msra.mxu0 %v195
    %238 = vmatprep.subr.bf16.mxu0 0
    %239 = vmatpush1.bf16.msra.mxu0 %v196
    %240 = vmatprep.subr.bf16.mxu0 0
    %241 = vmatpush1.bf16.msra.mxu0 %v197
    %242 = vmatprep.subr.bf16.mxu0 0
    %243 = vmatpush1.bf16.msra.mxu0 %v198
    %244 = vmatprep.subr.bf16.mxu0 0
    %245 = vmatpush1.bf16.msra.mxu0 %v199
    %246 = vmatprep.subr.bf16.mxu0 0
    %247 = vmatpush1.bf16.msra.mxu0 %v200
    %248 = vmatprep.subr.bf16.mxu0 0
    %249 = vmatpush1.bf16.msra.mxu0 %v201
    %250 = vmatprep.mubr.bf16.mxu0 %v121
    %251 = vmatmul.mubr.bf16.gmra.mrb[0].mxu0 %v120
    %v252 = vpop.f32.mrb[0].mxu0
    %v253 = vadd.f32 0.0, %v252
    %v254 = vpop.f32.mrb[0].mxu0
    %v255 = vpop.f32.mrb[0].mxu0
    %v256 = vpop.f32.mrb[0].mxu0
    %257 = vdwg.mxu0
    %v258 = vadd.f32 %v117, %v253
    %259 = vst [vmem:[#allocation2] sm:$0xff] %v258
    %v260 = vld [vmem:[#allocation3] sm:$0xff]
    %v261 = vld [vmem:[#allocation7] sm:$0xff]
    %v262 = vld [vmem:[#allocation7 + $0x8] sm:$0xff]
    %v263 = vpack.c.bf16 %v261, %v261
    %v264 = vpack.c.bf16 %v262, %v262
    %265 = vmatprep.subr.bf16.mxu0 0
    %266 = vmatpush1.bf16.msra.mxu0 %v186
    %267 = vmatprep.subr.bf16.mxu0 0
    %268 = vmatpush1.bf16.msra.mxu0 %v187
    %269 = vmatprep.subr.bf16.mxu0 0
    %270 = vmatpush1.bf16.msra.mxu0 %v188
    %271 = vmatprep.subr.bf16.mxu0 0
    %272 = vmatpush1.bf16.msra.mxu0 %v189
    %273 = vmatprep.subr.bf16.mxu0 0
    %274 = vmatpush1.bf16.msra.mxu0 %v190
    %275 = vmatprep.subr.bf16.mxu0 0
    %276 = vmatpush1.bf16.msra.mxu0 %v191
    %277 = vmatprep.subr.bf16.mxu0 0
    %278 = vmatpush1.bf16.msra.mxu0 %v192
    %279 = vmatprep.subr.bf16.mxu0 0
    %280 = vmatpush1.bf16.msra.mxu0 %v193
    %281 = vmatprep.subr.bf16.mxu0 0
    %282 = vmatpush1.bf16.msra.mxu0 %v194
    %283 = vmatprep.subr.bf16.mxu0 0
    %284 = vmatpush1.bf16.msra.mxu0 %v195
    %285 = vmatprep.subr.bf16.mxu0 0
    %286 = vmatpush1.bf16.msra.mxu0 %v196
    %287 = vmatprep.subr.bf16.mxu0 0
    %288 = vmatpush1.bf16.msra.mxu0 %v197
    %289 = vmatprep.subr.bf16.mxu0 0
    %290 = vmatpush1.bf16.msra.mxu0 %v198
    %291 = vmatprep.subr.bf16.mxu0 0
    %292 = vmatpush1.bf16.msra.mxu0 %v199
    %293 = vmatprep.subr.bf16.mxu0 0
    %294 = vmatpush1.bf16.msra.mxu0 %v200
    %295 = vmatprep.subr.bf16.mxu0 0
    %296 = vmatpush1.bf16.msra.mxu0 %v201
    %297 = vmatprep.mubr.bf16.mxu0 %v264
    %298 = vmatmul.mubr.bf16.gmra.mrb[0].mxu0 %v263
    %v299 = vpop.f32.mrb[0].mxu0
    %v300 = vadd.f32 0.0, %v299
    %v301 = vpop.f32.mrb[0].mxu0
    %v302 = vpop.f32.mrb[0].mxu0
    %v303 = vpop.f32.mrb[0].mxu0
    %304 = vdwg.mxu0
    %v305 = vadd.f32 %v260, %v300
    %306 = vst [vmem:[#allocation3] sm:$0xff] %v305
    // Predicated region
    $region46: #{tpu_custom_call.1} parent=1 // pred_check
      %p307 = pneg %p111
    $region47: #{tpu_custom_call.1} parent=1 // pred_check_branch
      %309 = sbr.rel (%p307) target = $region49
    $region48: #{tpu_custom_call.1} parent=1 // pred_region
      %v310 = vld [vmem:[#allocation10] sm:$0xf]
      %v311 = vld [vmem:[#allocation10 + $0x4] sm:$0xf]
      %v312 = vld [vmem:[#allocation10 + $0x8] sm:$0xf]
      %v313 = vld [vmem:[#allocation10 + $0xc] sm:$0xf]
      %v314 = vld [vmem:[#allocation10 + $0x10] sm:$0xf]
      %v315 = vld [vmem:[#allocation10 + $0x14] sm:$0xf]
      %v316 = vld [vmem:[#allocation10 + $0x18] sm:$0xf]
      %v317 = vld [vmem:[#allocation10 + $0x1c] sm:$0xf]
      %v318 = vld [vmem:[#allocation10 + $0x20] sm:$0xf]
      %v319 = vld [vmem:[#allocation10 + $0x24] sm:$0xf]
      %v320 = vld [vmem:[#allocation10 + $0x28] sm:$0xf]
      %v321 = vld [vmem:[#allocation10 + $0x2c] sm:$0xf]
      %v322 = vld [vmem:[#allocation10 + $0x30] sm:$0xf]
      %v323 = vld [vmem:[#allocation10 + $0x34] sm:$0xf]
      %v324 = vld [vmem:[#allocation10 + $0x38] sm:$0xf]
      %v325 = vld [vmem:[#allocation10 + $0x3c] sm:$0xf]
      %v326 = vld [vmem:[%s3] sm:$0x1]
      %v327 = vld [vmem:[%s5] sm:$0x1]
      %v328 = vld [vmem:[#allocation2] sm:$0xff]
      %v330 = vlaneseq
      %v331 = vshrl.u32 %v330, 7
      %v332 = vsub.s32 0, %v331
      %v333 = vrot.slane %v326, %v332
      %v335 = vadd.f32 %v328, %v333
      %v336 = vmax.f32 %v335, 0.0
      %v337 = vld [vmem:[#allocation3] sm:$0xff]
      %v338 = vadd.f32 %v337, %v333
      %v339 = vmax.f32 %v338, 0.0
      %v340 = vpack.c.bf16 %v336, %v336
      %v342 = vlaneseq
      %v343 = vshrl.u32 %v342, 7
      %v344 = vsub.s32 0, %v343
      %v345 = vrot.slane %v327, %v344
      %v363 = vunpack.c.l.b16 %v310
      %v364 = vunpack.c.l.b16 %v311
      %v365 = vunpack.c.l.b16 %v312
      %v366 = vunpack.c.l.b16 %v313
      %v367 = vunpack.c.l.b16 %v314
      %v368 = vunpack.c.l.b16 %v315
      %v369 = vunpack.c.l.b16 %v316
      %v370 = vunpack.c.l.b16 %v317
      %v371 = vunpack.c.l.b16 %v318
      %v372 = vunpack.c.l.b16 %v319
      %v373 = vunpack.c.l.b16 %v320
      %v374 = vunpack.c.l.b16 %v321
      %v375 = vunpack.c.l.b16 %v322
      %v376 = vunpack.c.l.b16 %v323
      %v377 = vunpack.c.l.b16 %v324
      %v378 = vunpack.c.l.b16 %v325
      %v379 = vpack.c.b16 %v364, %v363
      %v380 = vpack.c.b16 %v366, %v365
      %v381 = vpack.c.b16 %v368, %v367
      %v382 = vpack.c.b16 %v370, %v369
      %v383 = vpack.c.b16 %v372, %v371
      %v384 = vpack.c.b16 %v374, %v373
      %v385 = vpack.c.b16 %v376, %v375
      %v386 = vpack.c.b16 %v378, %v377
      %395 = vmatprep.subr.bf16.mxu0 0
      %396 = vmatpush1.bf16.msra.mxu0 %v379
      %397 = vmatprep.subr.bf16.mxu0 0
      %398 = vmatpush1.bf16.msra.mxu0 %v380
      %399 = vmatprep.subr.bf16.mxu0 0
      %400 = vmatpush1.bf16.msra.mxu0 %v381
      %401 = vmatprep.subr.bf16.mxu0 0
      %402 = vmatpush1.bf16.msra.mxu0 %v382
      %403 = vmatprep.subr.bf16.mxu0 0
      %404 = vmatpush1.bf16.msra.mxu0 %v383
      %405 = vmatprep.subr.bf16.mxu0 0
      %406 = vmatpush1.bf16.msra.mxu0 %v384
      %407 = vmatprep.subr.bf16.mxu0 0
      %408 = vmatpush1.bf16.msra.mxu0 %v385
      %409 = vmatprep.subr.bf16.mxu0 0
      %410 = vmatpush1.bf16.msra.mxu0 %v386
      %411 = vmatprep.subr.bf16.mxu0 0
      %412 = vmatpush1.bf16.msra.mxu0 0
      %413 = vmatprep.subr.bf16.mxu0 0
      %414 = vmatpush1.bf16.msra.mxu0 0
      %415 = vmatprep.subr.bf16.mxu0 0
      %416 = vmatpush1.bf16.msra.mxu0 0
      %417 = vmatprep.subr.bf16.mxu0 0
      %418 = vmatpush1.bf16.msra.mxu0 0
      %419 = vmatprep.subr.bf16.mxu0 0
      %420 = vmatpush1.bf16.msra.mxu0 0
      %421 = vmatprep.subr.bf16.mxu0 0
      %422 = vmatpush1.bf16.msra.mxu0 0
      %423 = vmatprep.subr.bf16.mxu0 0
      %424 = vmatpush1.bf16.msra.mxu0 0
      %425 = vmatprep.subr.bf16.mxu0 0
      %426 = vmatpush1.bf16.msra.mxu0 0
      %427 = vmatprep.mubr.bf16.mxu0 0
      %428 = vmatmul.mubr.bf16.gmra.mrb[0].mxu0 %v340
      %v429 = vpop.f32.mrb[0].mxu0
      %v430 = vadd.f32 %v345, %v429
      %v431 = vpop.f32.mrb[0].mxu0
      %v432 = vpop.f32.mrb[0].mxu0
      %v433 = vpop.f32.mrb[0].mxu0
      %434 = vdwg.mxu0
      %v435 = vpack.c.bf16 %v430, %v430
      %436 = vst [vmem:[#allocation12] sm:$0xf] %v435
      %v437 = vpack.c.bf16 %v339, %v339
      %438 = vmatprep.subr.bf16.mxu0 0
      %439 = vmatpush1.bf16.msra.mxu0 %v379
      %440 = vmatprep.subr.bf16.mxu0 0
      %441 = vmatpush1.bf16.msra.mxu0 %v380
      %442 = vmatprep.subr.bf16.mxu0 0
      %443 = vmatpush1.bf16.msra.mxu0 %v381
      %444 = vmatprep.subr.bf16.mxu0 0
      %445 = vmatpush1.bf16.msra.mxu0 %v382
      %446 = vmatprep.subr.bf16.mxu0 0
      %447 = vmatpush1.bf16.msra.mxu0 %v383
      %448 = vmatprep.subr.bf16.mxu0 0
      %449 = vmatpush1.bf16.msra.mxu0 %v384
      %450 = vmatprep.subr.bf16.mxu0 0
      %451 = vmatpush1.bf16.msra.mxu0 %v385
      %452 = vmatprep.subr.bf16.mxu0 0
      %453 = vmatpush1.bf16.msra.mxu0 %v386
      %454 = vmatprep.subr.bf16.mxu0 0
      %455 = vmatpush1.bf16.msra.mxu0 0
      %456 = vmatprep.subr.bf16.mxu0 0
      %457 = vmatpush1.bf16.msra.mxu0 0
      %458 = vmatprep.subr.bf16.mxu0 0
      %459 = vmatpush1.bf16.msra.mxu0 0
      %460 = vmatprep.subr.bf16.mxu0 0
      %461 = vmatpush1.bf16.msra.mxu0 0
      %462 = vmatprep.subr.bf16.mxu0 0
      %463 = vmatpush1.bf16.msra.mxu0 0
      %464 = vmatprep.subr.bf16.mxu0 0
      %465 = vmatpush1.bf16.msra.mxu0 0
      %466 = vmatprep.subr.bf16.mxu0 0
      %467 = vmatpush1.bf16.msra.mxu0 0
      %468 = vmatprep.subr.bf16.mxu0 0
      %469 = vmatpush1.bf16.msra.mxu0 0
      %470 = vmatprep.mubr.bf16.mxu0 0
      %471 = vmatmul.mubr.bf16.gmra.mrb[0].mxu0 %v437
      %v472 = vpop.f32.mrb[0].mxu0
      %v473 = vadd.f32 %v345, %v472
      %v474 = vpop.f32.mrb[0].mxu0
      %v475 = vpop.f32.mrb[0].mxu0
      %v476 = vpop.f32.mrb[0].mxu0
      %477 = vdwg.mxu0
      %v478 = vpack.c.bf16 %v473, %v473
      %479 = vst [vmem:[#allocation13] sm:$0xf] %v478
    $region49: #{tpu_custom_call.1} parent=1 // pred_fallthru
      _
    // Predicated region
    $region50: #{tpu_custom_call.1} parent=1 // pred_check
      _
    $region51: #{tpu_custom_call.1} parent=1 // pred_check_branch
      %481 = sbr.rel (0) target = $region53
    $region52: #{tpu_custom_call.1} parent=1 // pred_region
      %s483 = ssub.s32 64, 64
      %484 = vsyncadd [#allocation6], %s483
      %s486 = sshll.u32 [#allocation12], 4
      %s487 = int_to_ptr.vmem [resolvable:$true] %s486
      %489 = dma.vmem_to_hbm [thread:$0]  %s487, 64, %s6, [#allocation6]
    $region53: #{tpu_custom_call.1} parent=1 // pred_fallthru
      _
    // Predicated region
    $region54: #{tpu_custom_call.1} parent=1 // pred_check
      _
    $region55: #{tpu_custom_call.1} parent=1 // pred_check_branch
      %491 = sbr.rel (0) target = $region57
    $region56: #{tpu_custom_call.1} parent=1 // pred_region
      %s493 = ssub.s32 64, 64
      %494 = vsyncadd [#allocation14], %s493
      %s496 = sshll.u32 [#allocation13], 4
      %s497 = int_to_ptr.vmem [resolvable:$true] %s496
      %499 = dma.vmem_to_hbm [thread:$0]  %s497, 64, %s7, [#allocation14]
    $region57: #{tpu_custom_call.1} parent=1 // pred_fallthru
      _
    // Predicated region
    $region58: #{tpu_custom_call.1} parent=1 // pred_check
      _
    $region59: #{tpu_custom_call.1} parent=1 // pred_check_branch
      %501 = sbr.rel (0) target = $region61
    $region60: #{tpu_custom_call.1} parent=1 // pred_region
      %502 = dma.done [#allocation6], 64
    $region61: #{tpu_custom_call.1} parent=1 // pred_fallthru
      _
    // Predicated region
    $region62: #{tpu_custom_call.1} parent=1 // pred_check
      _
    $region63: #{tpu_custom_call.1} parent=1 // pred_check_branch
      %504 = sbr.rel (0) target = $region65
    $region64: #{tpu_custom_call.1} parent=1 // pred_region
      %505 = dma.done [#allocation14], 64
    $region65: #{tpu_custom_call.1} parent=1 // pred_fallthru
      _
    %506 = vsyncpa [#allocation5], 1
    %507 = vsyncpa [#allocation8], 1
    %508 = vsyncpa [#allocation11], 1
    %509 = vsyncpa [#allocation6], 1
    %510 = vsyncpa [#allocation14], 1

</llo_original>
